<compile_context>
chip_gen: v6e
topology: v6e:2x2x1
jax: 0.10.0
libtpu: 0.0.40
codegen_flags: <defaults>
</compile_context>

<pallas_src>
import jax
import jax.numpy as jnp
from jax.experimental import pallas as pl
from jax.experimental.pallas import tpu as pltpu


def _add_relu_kernel(a_ref, b_ref, o_ref):
    # Pure streaming elementwise op on the VPU: add + relu, one store per tile.
    o_ref[...] = jnp.maximum(a_ref[...] + b_ref[...], 0.0)


_LANE_CANDIDATES = (2048, 1024, 512, 256, 128)   # lane-dense last-dim choices
_TARGET_TILE_BYTES = 1 << 20                     # ~1 MiB per operand tile


def add_relu(x260: jax.Array, x252: jax.Array) -> jax.Array:
    """Computes relu(x260 + x252) with a Pallas TPU kernel (same semantics as M.forward)."""
    assert x260.shape == x252.shape
    assert x260.dtype == x252.dtype
    orig_shape = x260.shape
    total = x260.size
    itemsize = jnp.dtype(x260.dtype).itemsize

    a_flat = x260.reshape(-1)
    b_flat = x252.reshape(-1)

    # Pick the largest lane width (multiple of 128) that divides the flat size;
    # if none divides, pad the flat arrays up to a multiple of 128.
    lane = next((l for l in _LANE_CANDIDATES if total % l == 0), None)
    padded_total = total
    if lane is None:
        lane = 128
        pad = (-total) % lane
        a_flat = jnp.pad(a_flat, (0, pad))
        b_flat = jnp.pad(b_flat, (0, pad))
        padded_total = total + pad

    rows = padded_total // lane
    a2 = a_flat.reshape(rows, lane)
    b2 = b_flat.reshape(rows, lane)

    # Row tile sized to ~1 MiB per operand; sublane dim must be a multiple of 8
    # unless it equals the full row extent.
    tile_r = max(8, min(512, _TARGET_TILE_BYTES // (lane * itemsize)))
    tile_r = (tile_r // 8) * 8
    if rows <= tile_r:
        tile_r = rows  # single block covering the full row extent (always legal)

    grid = (pl.cdiv(rows, tile_r),)
    block = (tile_r, lane)

    out2 = pl.pallas_call(
        _add_relu_kernel,
        out_shape=jax.ShapeDtypeStruct((rows, lane), x260.dtype),
        grid_spec=pltpu.PrefetchScalarGridSpec(
            num_scalar_prefetch=0,
            grid=grid,
            in_specs=[
                pl.BlockSpec(block, lambda i: (i, 0)),
                pl.BlockSpec(block, lambda i: (i, 0)),
            ],
            out_specs=pl.BlockSpec(block, lambda i: (i, 0)),
        ),
        compiler_params=pltpu.CompilerParams(
            dimension_semantics=("parallel",),
        ),
    )(a2, b2)

    out_flat = out2.reshape(-1)
    if padded_total != total:
        out_flat = out_flat[:total]
    return out_flat.reshape(orig_shape)


if __name__ == "__main__":
    key = jax.random.PRNGKey(0)
    k1, k2, k3, k4 = jax.random.split(key, 4)

    # Small shape consistent with the module's forward (NCHW, same shape both inputs).
    small_shape = (2, 4, 16, 16)
    x260_s = jax.random.normal(k1, small_shape, dtype=jnp.float32)
    x252_s = jax.random.normal(k2, small_shape, dtype=jnp.float32)
    out_s = add_relu(x260_s, x252_s)
    jax.block_until_ready(out_s)
    ref_s = jnp.maximum(x260_s + x252_s, 0.0)
    assert out_s.shape == small_shape
    assert jnp.allclose(out_s, ref_s, atol=1e-6), "mismatch vs reference (small shape)"

    # Module's actual activation shape (exercises the multi-step tiled grid path).
    model_shape = (1, 1024, 28, 28)
    x260_m = jax.random.normal(k3, model_shape, dtype=jnp.float32)
    x252_m = jax.random.normal(k4, model_shape, dtype=jnp.float32)
    out_m = add_relu(x260_m, x252_m)
    jax.block_until_ready(out_m)
    ref_m = jnp.maximum(x260_m + x252_m, 0.0)
    assert out_m.shape == model_shape
    assert jnp.allclose(out_m, ref_m, atol=1e-6), "mismatch vs reference (model shape)"

    print("KERNEL_OK")
</pallas_src>

<mosaic_0001>
module attributes {stable_mosaic.version = 11 : i64} {
  func.func @_add_relu_kernel(%arg0: i32, %arg1: memref<1x2048xf32, #tpu.memory_space<vmem>>, %arg2: memref<1x2048xf32, #tpu.memory_space<vmem>>, %arg3: memref<1x2048xf32, #tpu.memory_space<vmem>>) attributes {dimension_semantics = [#tpu.dimension_semantics<parallel>], iteration_bounds = array<i64: 1>, scalar_prefetch = 0 : i64, scratch_operands = 0 : i64, tpu.core_type = #tpu.core_type<tc>, window_params = [{transform_indices = @transform_0, window_bounds = array<i64: 1, 2048>}, {transform_indices = @transform_1, window_bounds = array<i64: 1, 2048>}, {transform_indices = @transform_2, window_bounds = array<i64: 1, 2048>}]} {
    %c0 = arith.constant 0 : index
    %c0_0 = arith.constant 0 : index
    %0 = vector.load %arg1[%c0, %c0_0] : memref<1x2048xf32, #tpu.memory_space<vmem>>, vector<1x2048xf32>
    %c0_1 = arith.constant 0 : index
    %c0_2 = arith.constant 0 : index
    %1 = vector.load %arg2[%c0_1, %c0_2] : memref<1x2048xf32, #tpu.memory_space<vmem>>, vector<1x2048xf32>
    %2 = arith.addf %0, %1 : vector<1x2048xf32>
    %cst = arith.constant 0.000000e+00 : f32
    %3 = vector.broadcast %cst : f32 to vector<1x2048xf32>
    %4 = arith.maximumf %2, %3 : vector<1x2048xf32>
    %c0_3 = arith.constant 0 : index
    %c0_4 = arith.constant 0 : index
    %5 = vector.load %arg3[%c0_3, %c0_4] : memref<1x2048xf32, #tpu.memory_space<vmem>>, vector<1x2048xf32>
    tpu.vector_store %arg3[%c0_3, %c0_4], %4 {strides = array<i32>} : memref<1x2048xf32, #tpu.memory_space<vmem>>, vector<1x2048xf32>,
    return
  }
  func.func @transform_0(%arg0: i32) -> (i32, i32) {
    %c0_i32 = arith.constant 0 : i32
    %c0_i32_0 = arith.constant 0 : i32
    return %arg0, %c0_i32 : i32, i32
  }
  func.func @transform_1(%arg0: i32) -> (i32, i32) {
    %c0_i32 = arith.constant 0 : i32
    %c0_i32_0 = arith.constant 0 : i32
    return %arg0, %c0_i32 : i32, i32
  }
  func.func @transform_2(%arg0: i32) -> (i32, i32) {
    %c0_i32 = arith.constant 0 : i32
    %c0_i32_0 = arith.constant 0 : i32
    return %arg0, %c0_i32 : i32, i32
  }
}

</mosaic_0001>

<llo_original>
// kernel: tpu_custom_call.1
$region0: #{tpu_custom_call.1}
  #allocation0 [shape = 'u32[]', space=smem, size = 0x4, offset = 0x4, fixed_abs, tag = 'smem constant byte address 0x4 - core index']
  #allocation1 [shape = 'u32[144,128]{1,0:T(1,128)}', space=vmem, size = 0x12000, scoped, tag = 'internal scratch']
  %s0 = inlined_call_operand.hbm [shape: f32[1,2048], index: 0, kind: input, shape index: {}]
  %s1 = inlined_call_operand.hbm [shape: f32[1,2048], index: 1, kind: input, shape index: {}]
  %s2 = inlined_call_operand.hbm [shape: f32[1,2048], index: 2, kind: output, shape index: {}]
  %s3 = sld [smem:[#allocation0]]
  $region26: #{tpu_custom_call.1} parent=0
    _
  %s5 = ssub.s32 1, %s3
  %s6 = scalar_select 0, %s5, %s3
  $region1: #{tpu_custom_call.1} parent=0
    #allocation2 [shape = 'u8[8192]{0}', space=vmem, size = 0x2000, scoped, tag = 'input window, operand 0, single buffered']
    #allocation3 [shape = 's32[1]{0}', space=sflag, size = 0x4, scoped, tag = 'scoped memory for tpu_custom_call.1']
    #allocation4 [shape = 's32[1]{0}', space=sflag, size = 0x4, scoped, tag = 'scoped memory for tpu_custom_call.1']
    #allocation5 [shape = 'u8[8192]{0}', space=vmem, size = 0x2000, scoped, tag = 'input window, operand 1, single buffered']
    #allocation6 [shape = 's32[1]{0}', space=sflag, size = 0x4, scoped, tag = 'scoped memory for tpu_custom_call.1']
    #allocation7 [shape = 'u8[8192]{0}', space=vmem, size = 0x2000, scoped, tag = 'output window, operand 0, single buffered']
    %7 = vsyncpa [#allocation3], 0
    %8 = vsyncpa [#allocation6], 0
    %9 = vsyncpa [#allocation4], 0
    // Predicated region
    $region2: #{tpu_custom_call.1} parent=1 // pred_check
      _
    $region3: #{tpu_custom_call.1} parent=1 // pred_check_branch
      %11 = sbr.rel (0) target = $region5
    $region4: #{tpu_custom_call.1} parent=1 // pred_region
      %s13 = ssub.s32 256, 256
      %14 = vsyncadd [#allocation3], %s13
      %s16 = sshll.u32 [#allocation2], 4
      %s17 = int_to_ptr.vmem [resolvable:$true] %s16
      %19 = dma.hbm_to_vmem [thread:$0]  %s0, 256, %s17, [#allocation3]
    $region5: #{tpu_custom_call.1} parent=1 // pred_fallthru
      _
    // Predicated region
    $region6: #{tpu_custom_call.1} parent=1 // pred_check
      _
    $region7: #{tpu_custom_call.1} parent=1 // pred_check_branch
      %21 = sbr.rel (0) target = $region9
    $region8: #{tpu_custom_call.1} parent=1 // pred_region
      %s23 = ssub.s32 256, 256
      %24 = vsyncadd [#allocation6], %s23
      %s26 = sshll.u32 [#allocation5], 4
      %s27 = int_to_ptr.vmem [resolvable:$true] %s26
      %29 = dma.hbm_to_vmem [thread:$0]  %s1, 256, %s27, [#allocation6]
    $region9: #{tpu_custom_call.1} parent=1 // pred_fallthru
      _
    // Predicated region
    $region10: #{tpu_custom_call.1} parent=1 // pred_check
      _
    $region11: #{tpu_custom_call.1} parent=1 // pred_check_branch
      %31 = sbr.rel (0) target = $region13
    $region12: #{tpu_custom_call.1} parent=1 // pred_region
      %32 = dma.done [#allocation3], 256
    $region13: #{tpu_custom_call.1} parent=1 // pred_fallthru
      _
    // Predicated region
    $region14: #{tpu_custom_call.1} parent=1 // pred_check
      _
    $region15: #{tpu_custom_call.1} parent=1 // pred_check_branch
      %34 = sbr.rel (0) target = $region17
    $region16: #{tpu_custom_call.1} parent=1 // pred_region
      %35 = dma.done [#allocation6], 256
    $region17: #{tpu_custom_call.1} parent=1 // pred_fallthru
      _
    %v36 = vld [vmem:[#allocation2] sm:$0xff]
    %v37 = vld [vmem:[#allocation2 + $0x8] sm:$0xff]
    %v38 = vld [vmem:[#allocation5] sm:$0xff]
    %v39 = vld [vmem:[#allocation5 + $0x8] sm:$0xff]
    %v40 = vadd.f32 %v36, %v38
    %v41 = vadd.f32 %v37, %v39
    %v42 = vmax.f32 %v40, 0.0
    %v43 = vmax.f32 %v41, 0.0
    %44 = vst [vmem:[#allocation7] sm:$0xff] %v42
    %45 = vst [vmem:[#allocation7 + $0x8] sm:$0xff] %v43
    // Predicated region
    $region18: #{tpu_custom_call.1} parent=1 // pred_check
      _
    $region19: #{tpu_custom_call.1} parent=1 // pred_check_branch
      %47 = sbr.rel (0) target = $region21
    $region20: #{tpu_custom_call.1} parent=1 // pred_region
      %s49 = ssub.s32 256, 256
      %50 = vsyncadd [#allocation4], %s49
      %s52 = sshll.u32 [#allocation7], 4
      %s53 = int_to_ptr.vmem [resolvable:$true] %s52
      %55 = dma.vmem_to_hbm [thread:$0]  %s53, 256, %s2, [#allocation4]
    $region21: #{tpu_custom_call.1} parent=1 // pred_fallthru
      _
    // Predicated region
    $region22: #{tpu_custom_call.1} parent=1 // pred_check
      _
    $region23: #{tpu_custom_call.1} parent=1 // pred_check_branch
      %57 = sbr.rel (0) target = $region25
    $region24: #{tpu_custom_call.1} parent=1 // pred_region
      %58 = dma.done [#allocation4], 256
    $region25: #{tpu_custom_call.1} parent=1 // pred_fallthru
      _
    %59 = vsyncpa [#allocation3], 1
    %60 = vsyncpa [#allocation6], 1
    %61 = vsyncpa [#allocation4], 1

</llo_original>
